<compile_context>
chip_gen: v7x
topology: tpu7x:2x2x1
jax: 0.10.0
libtpu: 0.0.40
codegen_flags: <defaults>
</compile_context>

<pallas_src>
import math
import functools

import jax
import jax.numpy as jnp
from jax.experimental import pallas as pl
from jax.experimental.pallas import tpu as pltpu


def _kv_proj_kernel(x_ref, wkv_ref, bkv_ref, k_ref, v_ref, *, c):
    """Fused K/V projection for one (batch, seq-tile) grid step (NCS layout).

    x_ref   : (1, C, t)  f32   input tile (channels on sublanes, seq on lanes)
    wkv_ref : (2C, C)    bf16  stacked [Wk; Wv], (out, in) layout
    bkv_ref : (2C, 1)    f32
    k_ref   : (1, C, t)  bf16  K^T tile
    v_ref   : (1, C, t)  bf16  V^T tile
    """
    x = x_ref[0].astype(jnp.bfloat16)                                   # (C, t)
    kv = jnp.dot(wkv_ref[...], x, preferred_element_type=jnp.float32)   # (2C, t)
    kv = kv + bkv_ref[...]
    k_ref[0] = kv[:c].astype(k_ref.dtype)
    v_ref[0] = kv[c:].astype(v_ref.dtype)


def _flash_attn_kernel(x_ref, k_ref, v_ref, wq_ref, bq_ref, wout_ref, bout_ref,
                       o_ref, q_sc, m_sc, l_sc, acc_sc, *, scale, tkv):
    """Flash-attention step for one (batch, q_tile, kv_tile) grid point.

    x_ref    : (1, C, tq) f32   input tile (Q projection + residual)
    k_ref    : (1, C, S)  bf16  full-sequence K^T, resident in VMEM per batch
    v_ref    : (1, C, S)  bf16  full-sequence V^T, resident in VMEM per batch
    wq_ref   : (C, C)     bf16  (out, in)
    bq_ref   : (C, 1)     f32
    wout_ref : (C, C)     bf16  (out, in)
    bout_ref : (C, 1)     f32
    o_ref    : (1, C, tq) f32   out_proj(attn) + residual, NCS layout
    scratch  : q_sc (tq,C) bf16, m_sc/l_sc (tq,1) f32, acc_sc (tq,C) f32
    """
    ki = pl.program_id(2)

    @pl.when(ki == 0)
    def _():
        # Project Q once per q-tile; fold 1/sqrt(C) into Q.  One explicit
        # (C,tq)->(tq,C) transpose per q-tile (XLU slot) keeps all per-kv-step
        # matmuls in natively supported (1,0)/(1,1) contraction patterns.
        x2d = x_ref[0].astype(jnp.bfloat16)                             # (C, tq)
        q_t = jnp.dot(wq_ref[...], x2d, preferred_element_type=jnp.float32)
        q_t = (q_t + bq_ref[...]) * scale                               # (C, tq)
        q_sc[...] = jnp.transpose(q_t).astype(q_sc.dtype)               # (tq, C)
        m_sc[...] = jnp.full_like(m_sc, -jnp.inf)
        l_sc[...] = jnp.zeros_like(l_sc)
        acc_sc[...] = jnp.zeros_like(acc_sc)

    start = pl.multiple_of(ki * tkv, tkv)
    k = k_ref[0, :, pl.ds(start, tkv)]                                  # (C, tkv)
    v = v_ref[0, :, pl.ds(start, tkv)]                                  # (C, tkv)

    # scores = Q @ K^T : (tq, C) x (C, tkv) -> (tq, tkv), f32 accumulation.
    s = jnp.dot(q_sc[...], k, preferred_element_type=jnp.float32)

    m_prev = m_sc[...]
    m_new = jnp.maximum(m_prev, jnp.max(s, axis=-1, keepdims=True))
    alpha = jnp.exp(m_prev - m_new)
    # f32 exp everywhere (portable to v5e); l accumulation stays f32.
    p = jnp.exp(s - m_new)                                              # (tq, tkv)
    l_sc[...] = alpha * l_sc[...] + jnp.sum(p, axis=-1, keepdims=True)
    # P @ V via (1,1) contraction against V^T: (tq,tkv) x (C,tkv) -> (tq,C).
    acc_sc[...] = alpha * acc_sc[...] + jax.lax.dot_general(
        p.astype(jnp.bfloat16), v, (((1,), (1,)), ((), ())),
        preferred_element_type=jnp.float32)
    m_sc[...] = m_new

    @pl.when(ki == pl.num_programs(2) - 1)
    def _():
        attn = (acc_sc[...] * pl.reciprocal(l_sc[...], approx=True)
                ).astype(jnp.bfloat16)                                  # (tq, C)
        # out^T = Wout @ attn^T via (1,1) contraction -> (C, tq): lands
        # directly in the NCS output layout, no final transpose needed.
        out_t = jax.lax.dot_general(
            wout_ref[...], attn, (((1,), (1,)), ((), ())),
            preferred_element_type=jnp.float32)                         # (C, tq)
        out_t = out_t + bout_ref[...]
        o_ref[0] = (out_t + x_ref[0]).astype(o_ref.dtype)


def _pick_tile(s: int, pref: int) -> int:
    """Largest multiple-of-128 divisor of s that is <= pref (else s itself)."""
    if s <= pref:
        return s
    for t in range(min(pref, s), 127, -1):
        if s % t == 0 and t % 128 == 0:
            return t
    return s  # awkward S: single full-sequence tile (always layout-legal)


def _vmem_limit_bytes(need: int) -> int:
    """Scoped-VMEM request: actual need + margin, capped at 3/4 of physical
    VMEM (v7x only has 64 MiB per TensorCore; v5e/v6e have 128 MiB)."""
    try:
        cap = pltpu.get_tpu_info().vmem_capacity_bytes
    except Exception:
        cap = 64 * 1024 * 1024
    return int(min(max(need + (4 << 20), 32 << 20), (cap * 3) // 4))


def vae_attention_block(x_nchw, params, *, tq=1024, tkv=512, proj_tile=2048):
    """Forward pass of VAE_AttentionBlock: out = self_attention(x_seq) + x.

    (The quoted PyTorch forward never applies the GroupNorm from __init__.)
    """
    n, c, h, w = x_nchw.shape
    s = h * w
    tq = _pick_tile(s, tq)
    tkv = _pick_tile(s, tkv)
    tp = _pick_tile(s, proj_tile)
    # v7x has 2 TensorCores: keep the parallel grid (n, s//tq) splittable.
    if n * (s // tq) < 2 and s % 256 == 0:
        tq = s // 2
    compute_dtype = jnp.bfloat16
    f32 = jnp.float32

    # NCHW -> (N, C, S) is a free view (no data movement); both kernels work
    # directly in this layout, so no XLA transpose passes are emitted.
    x_ncs = x_nchw.reshape(n, c, s)

    # Weights stay in PyTorch (out, in) orientation -> no host-side transposes.
    w_in = params["in_proj_w"]            # (3C, C) rows = [Wq; Wk; Wv]
    b_in = params["in_proj_b"]            # (3C,)
    wq = w_in[:c].astype(compute_dtype)                       # (C, C)
    wkv = w_in[c:].astype(compute_dtype)                      # (2C, C) = [Wk; Wv]
    bq = b_in[:c].reshape(c, 1).astype(f32)
    bkv = b_in[c:].reshape(2 * c, 1).astype(f32)
    wout = params["out_proj_w"].astype(compute_dtype)         # (C, C)
    bout = params["out_proj_b"].reshape(c, 1).astype(f32)

    # ---- Kernel 1: fused K/V projection (bf16 outputs halve HBM writeback) ----
    need1 = (2 * (c * tp * 4)                      # x block, double buffered
             + 2 * 2 * (c * tp * 2)                # K + V blocks, double buffered
             + 2 * (2 * c * c * 2 + 2 * c * 4)     # weights + bias
             + 2 * c * tp * 4)                     # f32 matmul temporaries
    k_all, v_all = pl.pallas_call(
        functools.partial(_kv_proj_kernel, c=c),
        out_shape=(jax.ShapeDtypeStruct((n, c, s), compute_dtype),
                   jax.ShapeDtypeStruct((n, c, s), compute_dtype)),
        grid_spec=pltpu.PrefetchScalarGridSpec(
            num_scalar_prefetch=0,
            grid=(n, s // tp),
            in_specs=[
                pl.BlockSpec((1, c, tp), lambda b, j: (b, 0, j)),
                pl.BlockSpec((2 * c, c), lambda b, j: (0, 0)),
                pl.BlockSpec((2 * c, 1), lambda b, j: (0, 0)),
            ],
            out_specs=[
                pl.BlockSpec((1, c, tp), lambda b, j: (b, 0, j)),
                pl.BlockSpec((1, c, tp), lambda b, j: (b, 0, j)),
            ],
        ),
        compiler_params=pltpu.CompilerParams(
            dimension_semantics=("parallel", "parallel"),
            vmem_limit_bytes=_vmem_limit_bytes(need1)),
    )(x_ncs, wkv, bkv)

    # ---- Kernel 2: flash attention + Q proj + out_proj + residual.
    # K/V blocks cover the full sequence with a batch-only index_map, so they
    # are DMA'd from HBM once per batch and re-used across all q/kv tiles.
    need2 = (2 * 2 * (c * tq * 4)                  # x + out blocks, double buffered
             + 2 * 2 * (c * s * 2)                 # resident K + V, double buffered
             + 2 * (2 * c * c * 2 + 2 * c * 4)     # weights + bias
             + tq * c * 2 + tq * c * 4 + 2 * tq * 4  # q/acc/m/l scratch
             + 3 * tq * tkv * 4)                   # score/softmax temporaries
    kernel = functools.partial(_flash_attn_kernel,
                               scale=1.0 / math.sqrt(float(c)), tkv=tkv)
    out_ncs = pl.pallas_call(
        kernel,
        out_shape=jax.ShapeDtypeStruct((n, c, s), x_ncs.dtype),
        grid_spec=pltpu.PrefetchScalarGridSpec(
            num_scalar_prefetch=0,
            grid=(n, s // tq, s // tkv),
            in_specs=[
                pl.BlockSpec((1, c, tq), lambda b, qi, ki: (b, 0, qi)),  # x
                pl.BlockSpec((1, c, s), lambda b, qi, ki: (b, 0, 0)),    # K (resident)
                pl.BlockSpec((1, c, s), lambda b, qi, ki: (b, 0, 0)),    # V (resident)
                pl.BlockSpec((c, c), lambda b, qi, ki: (0, 0)),          # Wq
                pl.BlockSpec((c, 1), lambda b, qi, ki: (0, 0)),          # bq
                pl.BlockSpec((c, c), lambda b, qi, ki: (0, 0)),          # Wout
                pl.BlockSpec((c, 1), lambda b, qi, ki: (0, 0)),          # bout
            ],
            out_specs=pl.BlockSpec((1, c, tq), lambda b, qi, ki: (b, 0, qi)),
            scratch_shapes=[
                pltpu.VMEM((tq, c), compute_dtype),   # scaled Q tile (bf16)
                pltpu.VMEM((tq, 1), jnp.float32),     # running max m
                pltpu.VMEM((tq, 1), jnp.float32),     # running denom l
                pltpu.VMEM((tq, c), jnp.float32),     # output accumulator
            ],
        ),
        compiler_params=pltpu.CompilerParams(
            dimension_semantics=("parallel", "parallel", "arbitrary"),
            vmem_limit_bytes=_vmem_limit_bytes(need2)),
    )(x_ncs, k_all, v_all, wq, bq, wout, bout)

    # (N, C, S) -> NCHW is again a free view.
    return out_ncs.reshape(n, c, h, w)


def init_params(key, channels):
    """Deterministic synthetic parameters mirroring the module's __init__."""
    k1, k2, k3, k4 = jax.random.split(key, 4)
    scale = 1.0 / math.sqrt(channels)
    return {
        # GroupNorm(32, channels) — defined in __init__ but NOT used in forward
        "gn_weight": jnp.ones((channels,), jnp.float32),
        "gn_bias": jnp.zeros((channels,), jnp.float32),
        # SelfAttention(1, channels): in_proj = Linear(C, 3C), out_proj = Linear(C, C)
        "in_proj_w": jax.random.normal(k1, (3 * channels, channels), jnp.float32) * scale,
        "in_proj_b": jax.random.normal(k2, (3 * channels,), jnp.float32) * 0.01,
        "out_proj_w": jax.random.normal(k3, (channels, channels), jnp.float32) * scale,
        "out_proj_b": jax.random.normal(k4, (channels,), jnp.float32) * 0.01,
    }


def _reference(x_nchw, params):
    """Pure-JAX f32 reference of the given PyTorch forward (for verification)."""
    n, c, h, w = x_nchw.shape
    s = h * w
    x = jnp.transpose(x_nchw.reshape(n, c, s), (0, 2, 1))      # (N, S, C)
    qkv = jnp.einsum("nsc,dc->nsd", x, params["in_proj_w"]) + params["in_proj_b"]
    q, k, v = jnp.split(qkv, 3, axis=-1)
    scores = jnp.einsum("nqc,nkc->nqk", q, k) / math.sqrt(c)
    wgt = jax.nn.softmax(scores, axis=-1)
    attn = jnp.einsum("nqk,nkc->nqc", wgt, v)
    out = jnp.einsum("nsc,dc->nsd", attn, params["out_proj_w"]) + params["out_proj_b"]
    out = out + x
    return jnp.transpose(out, (0, 2, 1)).reshape(n, c, h, w)


if __name__ == "__main__":
    # C multiple of 128 (lane/sublane friendly) and S = H*W = 256 so the
    # explicit-tile run exercises a 2x2 q/kv grid and dynamic K/V slices.
    N, C, H, W = 2, 128, 16, 16
    key = jax.random.PRNGKey(0)
    kx, kp = jax.random.split(key)
    x = jax.random.normal(kx, (N, C, H, W), jnp.float32)
    params = init_params(kp, C)

    ref = _reference(x, params)

    # Multi-tile path: online-softmax accumulation + dynamic kv slicing.
    out = jax.block_until_ready(
        vae_attention_block(x, params, tq=128, tkv=128, proj_tile=128))
    assert out.shape == (N, C, H, W)
    assert jnp.allclose(out, ref, atol=3e-2, rtol=3e-2), "mismatch (tiled path)"

    # Default-tile path (single q/kv tile per batch at this small S).
    out2 = jax.block_until_ready(vae_attention_block(x, params))
    assert jnp.allclose(out2, ref, atol=3e-2, rtol=3e-2), "mismatch (default tiles)"

    print("KERNEL_OK")
</pallas_src>

<mosaic_0001>
module attributes {stable_mosaic.version = 11 : i64} {
  func.func @_kv_proj_kernel(%arg0: i32, %arg1: i32, %arg2: memref<1x128x128xf32, #tpu.memory_space<vmem>>, %arg3: memref<256x128xbf16, #tpu.memory_space<vmem>>, %arg4: memref<256x1xf32, #tpu.memory_space<vmem>>, %arg5: memref<1x128x128xbf16, #tpu.memory_space<vmem>>, %arg6: memref<1x128x128xbf16, #tpu.memory_space<vmem>>) attributes {dimension_semantics = [#tpu.dimension_semantics<parallel>, #tpu.dimension_semantics<parallel>], iteration_bounds = array<i64: 2, 2>, scalar_prefetch = 0 : i64, scratch_operands = 0 : i64, tpu.core_type = #tpu.core_type<tc>, window_params = [{transform_indices = @transform_0, window_bounds = array<i64: 1, 128, 128>}, {pipeline_mode = #tpu.pipeline_mode<synchronous>, transform_indices = @transform_1, window_bounds = array<i64: 256, 128>}, {pipeline_mode = #tpu.pipeline_mode<synchronous>, transform_indices = @transform_2, window_bounds = array<i64: 256, 1>}, {transform_indices = @transform_3, window_bounds = array<i64: 1, 128, 128>}, {transform_indices = @transform_4, window_bounds = array<i64: 1, 128, 128>}]} {
    %c0 = arith.constant 0 : index
    %c0_0 = arith.constant 0 : index
    %c0_1 = arith.constant 0 : index
    %0 = vector.load %arg2[%c0, %c0_0, %c0_1] : memref<1x128x128xf32, #tpu.memory_space<vmem>>, vector<1x128x128xf32>
    %1 = vector.shape_cast %0 : vector<1x128x128xf32> to vector<128x128xf32>
    %2 = arith.truncf %1 : vector<128x128xf32> to vector<128x128xbf16>
    %c0_2 = arith.constant 0 : index
    %c0_3 = arith.constant 0 : index
    %3 = vector.load %arg3[%c0_2, %c0_3] : memref<256x128xbf16, #tpu.memory_space<vmem>>, vector<256x128xbf16>
    %cst = arith.constant dense<0.000000e+00> : vector<256x128xf32>
    %4 = tpu.matmul %3, %2, %cst {dimension_numbers = #tpu.dot_dimension_numbers<[1], [0], [0], [1], [0, 0, 1, 1], [], []>} : vector<256x128xbf16>, vector<128x128xbf16>, vector<256x128xf32> -> vector<256x128xf32>
    %c0_4 = arith.constant 0 : index
    %c0_5 = arith.constant 0 : index
    %5 = vector.load %arg4[%c0_4, %c0_5] : memref<256x1xf32, #tpu.memory_space<vmem>>, vector<256x1xf32>
    %6 = vector.broadcast %5 : vector<256x1xf32> to vector<256x128xf32>
    %7 = arith.addf %4, %6 : vector<256x128xf32>
    %8 = vector.extract_strided_slice %7 {offsets = [0, 0], sizes = [128, 128], strides = [1, 1]} : vector<256x128xf32> to vector<128x128xf32>
    %9 = arith.truncf %8 : vector<128x128xf32> to vector<128x128xbf16>
    %c0_6 = arith.constant 0 : index
    %c0_7 = arith.constant 0 : index
    %c0_8 = arith.constant 0 : index
    %10 = vector.load %arg5[%c0_6, %c0_7, %c0_8] : memref<1x128x128xbf16, #tpu.memory_space<vmem>>, vector<1x128x128xbf16>
    %11 = vector.shape_cast %10 : vector<1x128x128xbf16> to vector<128x128xbf16>
    %12 = vector.shape_cast %9 : vector<128x128xbf16> to vector<1x128x128xbf16>
    tpu.vector_store %arg5[%c0_6, %c0_7, %c0_8], %12 {strides = array<i32>} : memref<1x128x128xbf16, #tpu.memory_space<vmem>>, vector<1x128x128xbf16>,
    %13 = vector.extract_strided_slice %7 {offsets = [128, 0], sizes = [128, 128], strides = [1, 1]} : vector<256x128xf32> to vector<128x128xf32>
    %14 = arith.truncf %13 : vector<128x128xf32> to vector<128x128xbf16>
    %c0_9 = arith.constant 0 : index
    %c0_10 = arith.constant 0 : index
    %c0_11 = arith.constant 0 : index
    %15 = vector.load %arg6[%c0_9, %c0_10, %c0_11] : memref<1x128x128xbf16, #tpu.memory_space<vmem>>, vector<1x128x128xbf16>
    %16 = vector.shape_cast %15 : vector<1x128x128xbf16> to vector<128x128xbf16>
    %17 = vector.shape_cast %14 : vector<128x128xbf16> to vector<1x128x128xbf16>
    tpu.vector_store %arg6[%c0_9, %c0_10, %c0_11], %17 {strides = array<i32>} : memref<1x128x128xbf16, #tpu.memory_space<vmem>>, vector<1x128x128xbf16>,
    return
  }
  func.func @transform_0(%arg0: i32, %arg1: i32) -> (i32, i32, i32) {
    %c0_i32 = arith.constant 0 : i32
    %c0_i32_0 = arith.constant 0 : i32
    return %arg0, %c0_i32, %arg1 : i32, i32, i32
  }
  func.func @transform_1(%arg0: i32, %arg1: i32) -> (i32, i32) {
    %c0_i32 = arith.constant 0 : i32
    %c0_i32_0 = arith.constant 0 : i32
    %c0_i32_1 = arith.constant 0 : i32
    return %c0_i32, %c0_i32_0 : i32, i32
  }
  func.func @transform_2(%arg0: i32, %arg1: i32) -> (i32, i32) {
    %c0_i32 = arith.constant 0 : i32
    %c0_i32_0 = arith.constant 0 : i32
    %c0_i32_1 = arith.constant 0 : i32
    return %c0_i32, %c0_i32_0 : i32, i32
  }
  func.func @transform_3(%arg0: i32, %arg1: i32) -> (i32, i32, i32) {
    %c0_i32 = arith.constant 0 : i32
    %c0_i32_0 = arith.constant 0 : i32
    return %arg0, %c0_i32, %arg1 : i32, i32, i32
  }
  func.func @transform_4(%arg0: i32, %arg1: i32) -> (i32, i32, i32) {
    %c0_i32 = arith.constant 0 : i32
    %c0_i32_0 = arith.constant 0 : i32
    return %arg0, %c0_i32, %arg1 : i32, i32, i32
  }
}

</mosaic_0001>

<llo_original>
// kernel: tpu_custom_call.1
$region0: #{tpu_custom_call.1}
  #allocation0 [shape = 'u32[]', space=smem, size = 0x4, offset = 0x4, fixed_abs, tag = 'smem constant byte address 0x4 - core index']
  #allocation1 [shape = 'u32[144,128]{1,0:T(1,128)}', space=vmem, size = 0x12000, scoped, tag = 'internal scratch']
  %s0 = inlined_call_operand.hbm [shape: f32[2,128,256], index: 0, kind: input, shape index: {}]
  %s1 = inlined_call_operand.vmem [shape: bf16[256,128], index: 1, kind: input, shape index: {}]
  %s2 = inlined_call_operand.vmem [shape: f32[256,1], index: 2, kind: input, shape index: {}]
  %s3 = inlined_call_operand.hbm [shape: bf16[2,128,256], index: 3, kind: output, shape index: {0}]
  %s4 = inlined_call_operand.hbm [shape: bf16[2,128,256], index: 4, kind: output, shape index: {1}]
  %5 = xla_tuple %s3, %s4
  %s6 = sld [smem:[#allocation0]]
  $region57: #{tpu_custom_call.1} parent=0
    _
  %s8 = ssub.s32 1, %s6
  %s9 = scalar_select 0, %s8, %s6
  $region1: #{tpu_custom_call.1} parent=0
    #allocation2 [shape = 'u8[131072]{0}', space=vmem, size = 0x20000, scoped, tag = 'input window, operand 0']
    #allocation3 [shape = 's32[2]{0}', space=sflag, size = 0x8, scoped, tag = 'scoped memory for tpu_custom_call.1']
    #allocation4 [shape = 's32[2]{0}', space=sflag, size = 0x8, scoped, tag = 'scoped memory for tpu_custom_call.1']
    #allocation5 [shape = 'u8[65536]{0}', space=vmem, size = 0x10000, scoped, tag = 'output window, operand 0']
    #allocation6 [shape = 'u8[65536]{0}', space=vmem, size = 0x10000, scoped, tag = 'output window, operand 1']
    #allocation7 [shape = 's32[2]{0}', space=sflag, size = 0x8, scoped, tag = 'scoped memory for tpu_custom_call.1']
    %10 = vsyncpa [#allocation3], 0
    %s11 = scalar_lea.sflag [#allocation3], 1
    %12 = vsyncpa %s11, 0
    %13 = vsyncpa [#allocation4], 0
    %s14 = scalar_lea.sflag [#allocation4], 1
    %15 = vsyncpa %s14, 0
    %16 = vsyncpa [#allocation7], 0
    %s17 = scalar_lea.sflag [#allocation7], 1
    %18 = vsyncpa %s17, 0
    loop: start=0, step=1, limit=6
    $region2: #{tpu_custom_call.1} parent=1 // loop_pre_header
      _
    $region3: #{tpu_custom_call.1} parent=1 // loop_header
      %s20 = sphi 0, %s24
      %p21 = scmp.ge.s32.totalorder %s20, 6
      %s27 = sphi 0, %s39
      %s28 = sphi 0, %s35
      %s29 = sphi 0, %s27
      %s30 = sphi 0, %s28
      %s31 = sphi 0, %s29
      %s32 = sphi 0, %s30
      %s44 = sphi 0, %s46
      %s47 = sphi 0, %s44
      %s48 = sphi 0, %s47
      %s64 = sphi 0, %s48
      %s68 = sphi 0, %s68
      %s70 = sphi 0, %s68
      %s71 = sphi 0, %s70
      %s85 = sphi 0, %s71
      %s89 = sphi 0, %s89
      %s91 = sphi 0, %s89
      %s92 = sphi 0, %s91
      %s106 = sphi 0, %s92
      %s114 = sphi 0, %s116
      %s117 = sphi 0, %s114
      %s118 = sphi 0, %s117
      %s134 = sphi 0, %s118
      %s142 = sphi 0, %s144
      %s145 = sphi 0, %s142
      %s146 = sphi 0, %s145
      %s162 = sphi 0, %s146
    $region4: #{tpu_custom_call.1} parent=1 // loop_header_branch
      %23 = sbr.rel (%p21) target = $region8
    $region5: #{tpu_custom_call.1} parent=1 // loop_body
      %s25 = ssub.s32 %s20, 1
      %s26 = ssub.s32 %s20, 2
      %s33 = sadd.s32 1, %s28
      %p34 = scmp.ge.s32.totalorder %s33, 2
      %s35 = scalar_select %p34, 0, %s33
      %s36 = sadd.s32 1, %s27
      %s37 = scalar_select %p34, %s36, %s27
      %p38 = scmp.ge.s32.totalorder %s37, 2
      %s39 = scalar_select %p38, 0, %s37
      %s40 = ssub.s32 %s27, %s39
      %s41 = ssub.s32 %s28, %s35
      %s42 = sor.u32 %s40, %s41
      %p43 = scmp.eq.s32.totalorder %s42, 0
      %s45 = sadd.s32 %s44, 1
      %s46 = scalar_select %p43, %s44, %s45
      %p49 = pneg %p43
      %p50 = scmp.eq.s32.totalorder %s20, 3
      %p51 = por %p49, %p50
      %p52 = scmp.ne.s32.totalorder %s44, %s47
      %p53 = scmp.eq.s32.totalorder %s20, 0
      %p54 = por %p52, %p53
      %p55 = scmp.ne.s32.totalorder %s44, %s47
      %p56 = scmp.eq.s32.totalorder %s25, 3
      %p57 = por %p55, %p56
      %p58 = scmp.ne.s32.totalorder %s47, %s48
      %p59 = scmp.eq.s32.totalorder %s25, 0
      %p60 = por %p58, %p59
      %p61 = scmp.ne.s32.totalorder %s47, %s48
      %p62 = scmp.eq.s32.totalorder %s26, 3
      %p63 = por %p61, %p62
      %p65 = scmp.ne.s32.totalorder %s48, %s64
      %p66 = scmp.eq.s32.totalorder %s26, 0
      %p67 = por %p65, %p66
      %s69 = sadd.s32 %s68, 1
      %p72 = scmp.eq.s32.totalorder %s20, 3
      %p73 = scmp.ne.s32.totalorder %s68, %s70
      %p74 = scmp.eq.s32.totalorder %s20, 0
      %p75 = por %p73, %p74
      %p76 = scmp.ne.s32.totalorder %s68, %s70
      %p77 = scmp.eq.s32.totalorder %s25, 3
      %p78 = por %p76, %p77
      %p79 = scmp.ne.s32.totalorder %s70, %s71
      %p80 = scmp.eq.s32.totalorder %s25, 0
      %p81 = por %p79, %p80
      %p82 = scmp.ne.s32.totalorder %s70, %s71
      %p83 = scmp.eq.s32.totalorder %s26, 3
      %p84 = por %p82, %p83
      %p86 = scmp.ne.s32.totalorder %s71, %s85
      %p87 = scmp.eq.s32.totalorder %s26, 0
      %p88 = por %p86, %p87
      %s90 = sadd.s32 %s89, 1
      %p93 = scmp.eq.s32.totalorder %s20, 3
      %p94 = scmp.ne.s32.totalorder %s89, %s91
      %p95 = scmp.eq.s32.totalorder %s20, 0
      %p96 = por %p94, %p95
      %p97 = scmp.ne.s32.totalorder %s89, %s91
      %p98 = scmp.eq.s32.totalorder %s25, 3
      %p99 = por %p97, %p98
      %p100 = scmp.ne.s32.totalorder %s91, %s92
      %p101 = scmp.eq.s32.totalorder %s25, 0
      %p102 = por %p100, %p101
      %p103 = scmp.ne.s32.totalorder %s91, %s92
      %p104 = scmp.eq.s32.totalorder %s26, 3
      %p105 = por %p103, %p104
      %p107 = scmp.ne.s32.totalorder %s92, %s106
      %p108 = scmp.eq.s32.totalorder %s26, 0
      %p109 = por %p107, %p108
      %s110 = ssub.s32 %s27, %s39
      %s111 = ssub.s32 %s28, %s35
      %s112 = sor.u32 %s110, %s111
      %p113 = scmp.eq.s32.totalorder %s112, 0
      %s115 = sadd.s32 %s114, 1
      %s116 = scalar_select %p113, %s114, %s115
      %p119 = pneg %p113
      %p120 = scmp.eq.s32.totalorder %s20, 3
      %p121 = por %p119, %p120
      %p122 = scmp.ne.s32.totalorder %s114, %s117
      %p123 = scmp.eq.s32.totalorder %s20, 0
      %p124 = por %p122, %p123
      %p125 = scmp.ne.s32.totalorder %s114, %s117
      %p126 = scmp.eq.s32.totalorder %s25, 3
      %p127 = por %p125, %p126
      %p128 = scmp.ne.s32.totalorder %s117, %s118
      %p129 = scmp.eq.s32.totalorder %s25, 0
      %p130 = por %p128, %p129
      %p131 = scmp.ne.s32.totalorder %s117, %s118
      %p132 = scmp.eq.s32.totalorder %s26, 3
      %p133 = por %p131, %p132
      %p135 = scmp.ne.s32.totalorder %s118, %s134
      %p136 = scmp.eq.s32.totalorder %s26, 0
      %p137 = por %p135, %p136
      %s138 = ssub.s32 %s27, %s39
      %s139 = ssub.s32 %s28, %s35
      %s140 = sor.u32 %s138, %s139
      %p141 = scmp.eq.s32.totalorder %s140, 0
      %s143 = sadd.s32 %s142, 1
      %s144 = scalar_select %p141, %s142, %s143
      %p147 = pneg %p141
      %p148 = scmp.eq.s32.totalorder %s20, 3
      %p149 = por %p147, %p148
      %p150 = scmp.ne.s32.totalorder %s142, %s145
      %p151 = scmp.eq.s32.totalorder %s20, 0
      %p152 = por %p150, %p151
      %p153 = scmp.ne.s32.totalorder %s142, %s145
      %p154 = scmp.eq.s32.totalorder %s25, 3
      %p155 = por %p153, %p154
      %p156 = scmp.ne.s32.totalorder %s145, %s146
      %p157 = scmp.eq.s32.totalorder %s25, 0
      %p158 = por %p156, %p157
      %p159 = scmp.ne.s32.totalorder %s145, %s146
      %p160 = scmp.eq.s32.totalorder %s26, 3
      %p161 = por %p159, %p160
      %p163 = scmp.ne.s32.totalorder %s146, %s162
      %p164 = scmp.eq.s32.totalorder %s26, 0
      %p165 = por %p163, %p164
      %p166 = scmp.le.s32.totalorder 1, %s20
      %p167 = scmp.lt.s32.totalorder %s20, 5
      %p168 = pnand %p166, %p167
      %p169 = pneg %p168
      // Predicated region
      $region9: #{tpu_custom_call.1} parent=5 // pred_check
        _
      $region10: #{tpu_custom_call.1} parent=5 // pred_check_branch
        %171 = sbr.rel (%p168) target = $region12
      $region11: #{tpu_custom_call.1} parent=5 // pred_region
        %s172 = ssub.s32 %s20, 1
        // Predicated region
        $region13: #{tpu_custom_call.1} parent=11 // pred_check
          %p173 = pneg %p81
        $region14: #{tpu_custom_call.1} parent=11 // pred_check_branch
          %175 = sbr.rel (%p173) target = $region16
        $region15: #{tpu_custom_call.1} parent=11 // pred_region
          _
        $region16: #{tpu_custom_call.1} parent=11 // pred_fallthru
          _
        // Predicated region
        $region17: #{tpu_custom_call.1} parent=11 // pred_check
          %p176 = pneg %p102
        $region18: #{tpu_custom_call.1} parent=11 // pred_check_branch
          %178 = sbr.rel (%p176) target = $region20
        $region19: #{tpu_custom_call.1} parent=11 // pred_region
          _
        $region20: #{tpu_custom_call.1} parent=11 // pred_fallthru
          _
      $region12: #{tpu_custom_call.1} parent=5 // pred_fallthru
        _
      %p179 = scmp.lt.s32.totalorder %s20, 4
      // Predicated region
      $region21: #{tpu_custom_call.1} parent=5 // pred_check
        %p180 = pneg %p179
      $region22: #{tpu_custom_call.1} parent=5 // pred_check_branch
        %182 = sbr.rel (%p180) target = $region24
      $region23: #{tpu_custom_call.1} parent=5 // pred_region
        // Predicated region
        $region25: #{tpu_custom_call.1} parent=23 // pred_check
          %p183 = pneg %p54
        $region26: #{tpu_custom_call.1} parent=23 // pred_check_branch
          %185 = sbr.rel (%p183) target = $region28
        $region27: #{tpu_custom_call.1} parent=23 // pred_region
          %s186 = sand.u32 %s44, 1
          %s187 = scalar_lea.sflag [#allocation3], %s186
          %s188 = sand.u32 %s44, 1
          %s189 = smul.addr %s188, 128
          %s190 = scalar_lea.vmem [#allocation2], %s189
          %s192 = ssub.s32 2048, 2048
          %193 = vsyncadd %s187, %s192
          %s194 = smul.addr %s27, 32
          %s195 = sadd.s32 %s28, %s194
          %s196 = smul.addr %s195, 128
          %s197 = scalar_lea.hbm %s0, %s196
          %s198 = sshll.u32 %s190, 4
          %s199 = int_to_ptr.vmem [resolvable:$true] %s198
          %204 = dma.hbm_to_vmem [thread:$0]  %s197, 2048, %s199, %s187, 256, 128, 8
        $region28: #{tpu_custom_call.1} parent=23 // pred_fallthru
          _
      $region24: #{tpu_custom_call.1} parent=5 // pred_fallthru
        _
      %p205 = scmp.le.s32.totalorder 1, %s20
      %p206 = scmp.lt.s32.totalorder %s20, 5
      %p207 = pnand %p205, %p206
      %p208 = pneg %p207
      // Predicated region
      $region29: #{tpu_custom_call.1} parent=5 // pred_check
        _
      $region30: #{tpu_custom_call.1} parent=5 // pred_check_branch
        %210 = sbr.rel (%p207) target = $region32
      $region31: #{tpu_custom_call.1} parent=5 // pred_region
        %s211 = ssub.s32 %s20, 1
        %s212 = sand.u32 %s47, 1
        %s213 = scalar_lea.sflag [#allocation3], %s212
        %s214 = sand.u32 %s47, 1
        %s215 = smul.addr %s214, 128
        %s216 = scalar_lea.vmem [#allocation2], %s215
        // Predicated region
        $region33: #{tpu_custom_call.1} parent=31 // pred_check
          %p217 = pneg %p60
        $region34: #{tpu_custom_call.1} parent=31 // pred_check_branch
          %219 = sbr.rel (%p217) target = $region36
        $region35: #{tpu_custom_call.1} parent=31 // pred_region
          %220 = dma.done %s213, 2048
        $region36: #{tpu_custom_call.1} parent=31 // pred_fallthru
          _
        %s221 = sand.u32 %s47, 1
        %s222 = scalar_lea.sflag [#allocation3], %s221
        %s223 = sand.u32 %s47, 1
        %s224 = smul.addr %s223, 128
        %s225 = scalar_lea.vmem [#allocation2], %s224
        %p226 = pneg %p60
        %p227 = pneg %p57
        %p228 = pneg %p81
        %p229 = pneg %p78
        %p230 = pneg %p102
        %p231 = pneg %p99
        %p232 = pneg %p130
        %p233 = pneg %p127
        %s234 = sand.u32 %s117, 1
        %s235 = scalar_lea.sflag [#allocation4], %s234
        %s236 = sand.u32 %s117, 1
        %s237 = smul.addr %s236, 64
        %s238 = scalar_lea.vmem [#allocation5], %s237
        %p239 = pneg %p158
        %p240 = pneg %p155
        %s241 = sand.u32 %s145, 1
        %s242 = scalar_lea.sflag [#allocation7], %s241
        %s243 = sand.u32 %s145, 1
        %s244 = smul.addr %s243, 64
        %s245 = scalar_lea.vmem [#allocation6], %s244
        %v247 = vld [vmem:[%s216] sm:$0xff]
        %v248 = vld [vmem:[%s216 + $0x8] sm:$0xff]
        %v249 = vld [vmem:[%s216 + $0x10] sm:$0xff]
        %v250 = vld [vmem:[%s216 + $0x18] sm:$0xff]
        %v251 = vld [vmem:[%s216 + $0x20] sm:$0xff]
        %v252 = vld [vmem:[%s216 + $0x28] sm:$0xff]
        %v253 = vld [vmem:[%s216 + $0x30] sm:$0xff]
        %v254 = vld [vmem:[%s216 + $0x38] sm:$0xff]
        %v255 = vld [vmem:[%s216 + $0x40] sm:$0xff]
        %v256 = vld [vmem:[%s216 + $0x48] sm:$0xff]
        %v257 = vld [vmem:[%s216 + $0x50] sm:$0xff]
        %v258 = vld [vmem:[%s216 + $0x58] sm:$0xff]
        %v259 = vld [vmem:[%s216 + $0x60] sm:$0xff]
        %v260 = vld [vmem:[%s216 + $0x68] sm:$0xff]
        %v261 = vld [vmem:[%s216 + $0x70] sm:$0xff]
        %v262 = vld [vmem:[%s216 + $0x78] sm:$0xff]
        %v263 = vpack.c.bf16 %v248, %v247
        %v264 = vpack.c.bf16 %v250, %v249
        %v265 = vpack.c.bf16 %v252, %v251
        %v266 = vpack.c.bf16 %v254, %v253
        %v267 = vpack.c.bf16 %v256, %v255
        %v268 = vpack.c.bf16 %v258, %v257
        %v269 = vpack.c.bf16 %v260, %v259
        %v270 = vpack.c.bf16 %v262, %v261
        %v271 = vld [vmem:[%s1] sm:$0xf]
        %v272 = vld [vmem:[%s1 + $0x4] sm:$0xf]
        %v273 = vld [vmem:[%s1 + $0x8] sm:$0xf]
        %v274 = vld [vmem:[%s1 + $0xc] sm:$0xf]
        %v275 = vld [vmem:[%s1 + $0x10] sm:$0xf]
        %v276 = vld [vmem:[%s1 + $0x14] sm:$0xf]
        %v277 = vld [vmem:[%s1 + $0x18] sm:$0xf]
        %v278 = vld [vmem:[%s1 + $0x1c] sm:$0xf]
        %v279 = vld [vmem:[%s1 + $0x20] sm:$0xf]
        %v280 = vld [vmem:[%s1 + $0x24] sm:$0xf]
        %v281 = vld [vmem:[%s1 + $0x28] sm:$0xf]
        %v282 = vld [vmem:[%s1 + $0x2c] sm:$0xf]
        %v283 = vld [vmem:[%s1 + $0x30] sm:$0xf]
        %v284 = vld [vmem:[%s1 + $0x34] sm:$0xf]
        %v285 = vld [vmem:[%s1 + $0x38] sm:$0xf]
        %v286 = vld [vmem:[%s1 + $0x3c] sm:$0xf]
        %v287 = vld [vmem:[%s1 + $0x40] sm:$0xf]
        %v288 = vld [vmem:[%s1 + $0x44] sm:$0xf]
        %v289 = vld [vmem:[%s1 + $0x48] sm:$0xf]
        %v290 = vld [vmem:[%s1 + $0x4c] sm:$0xf]
        %v291 = vld [vmem:[%s1 + $0x50] sm:$0xf]
        %v292 = vld [vmem:[%s1 + $0x54] sm:$0xf]
        %v293 = vld [vmem:[%s1 + $0x58] sm:$0xf]
        %v294 = vld [vmem:[%s1 + $0x5c] sm:$0xf]
        %v295 = vld [vmem:[%s1 + $0x60] sm:$0xf]
        %v296 = vld [vmem:[%s1 + $0x64] sm:$0xf]
        %v297 = vld [vmem:[%s1 + $0x68] sm:$0xf]
        %v298 = vld [vmem:[%s1 + $0x6c] sm:$0xf]
        %v299 = vld [vmem:[%s1 + $0x70] sm:$0xf]
        %v300 = vld [vmem:[%s1 + $0x74] sm:$0xf]
        %v301 = vld [vmem:[%s1 + $0x78] sm:$0xf]
        %v302 = vld [vmem:[%s1 + $0x7c] sm:$0xf]
        %v303 = vld [vmem:[%s2] sm:$0xff]
        %v304 = vld [vmem:[%s2 + $0x8] sm:$0xff]
        %v305 = vld [vmem:[%s2 + $0x10] sm:$0xff]
        %v306 = vld [vmem:[%s2 + $0x18] sm:$0xff]
        %v307 = vld [vmem:[%s2 + $0x20] sm:$0xff]
        %v308 = vld [vmem:[%s2 + $0x28] sm:$0xff]
        %v309 = vld [vmem:[%s2 + $0x30] sm:$0xff]
        %v310 = vld [vmem:[%s2 + $0x38] sm:$0xff]
        %v311 = vld [vmem:[%s2 + $0x40] sm:$0xff]
        %v312 = vld [vmem:[%s2 + $0x48] sm:$0xff]
        %v313 = vld [vmem:[%s2 + $0x50] sm:$0xff]
        %v314 = vld [vmem:[%s2 + $0x58] sm:$0xff]
        %v315 = vld [vmem:[%s2 + $0x60] sm:$0xff]
        %v316 = vld [vmem:[%s2 + $0x68] sm:$0xff]
        %v317 = vld [vmem:[%s2 + $0x70] sm:$0xff]
        %v318 = vld [vmem:[%s2 + $0x78] sm:$0xff]
        %v319 = vld [vmem:[%s2 + $0x80] sm:$0xff]
        %v320 = vld [vmem:[%s2 + $0x88] sm:$0xff]
        %v321 = vld [vmem:[%s2 + $0x90] sm:$0xff]
        %v322 = vld [vmem:[%s2 + $0x98] sm:$0xff]
        %v323 = vld [vmem:[%s2 + $0xa0] sm:$0xff]
        %v324 = vld [vmem:[%s2 + $0xa8] sm:$0xff]
        %v325 = vld [vmem:[%s2 + $0xb0] sm:$0xff]
        %v326 = vld [vmem:[%s2 + $0xb8] sm:$0xff]
        %v327 = vld [vmem:[%s2 + $0xc0] sm:$0xff]
        %v328 = vld [vmem:[%s2 + $0xc8] sm:$0xff]
        %v329 = vld [vmem:[%s2 + $0xd0] sm:$0xff]
        %v330 = vld [vmem:[%s2 + $0xd8] sm:$0xff]
        %v331 = vld [vmem:[%s2 + $0xe0] sm:$0xff]
        %v332 = vld [vmem:[%s2 + $0xe8] sm:$0xff]
        %v333 = vld [vmem:[%s2 + $0xf0] sm:$0xff]
        %v334 = vld [vmem:[%s2 + $0xf8] sm:$0xff]
        %336 = vset.pattern.permute.xlu0 0
        %337 = vperm.xlu0 %336, %v303
        %v338 = vpop.permute.xlu0 %337
        %341 = vset.pattern.permute.xlu0 0
        %342 = vperm.xlu0 %341, %v304
        %v343 = vpop.permute.xlu0 %342
        %346 = vset.pattern.permute.xlu0 0
        %347 = vperm.xlu0 %346, %v305
        %v348 = vpop.permute.xlu0 %347
        %351 = vset.pattern.permute.xlu0 0
        %352 = vperm.xlu0 %351, %v306
        %v353 = vpop.permute.xlu0 %352
        %356 = vset.pattern.permute.xlu0 0
        %357 = vperm.xlu0 %356, %v307
        %v358 = vpop.permute.xlu0 %357
        %361 = vset.pattern.permute.xlu0 0
        %362 = vperm.xlu0 %361, %v308
        %v363 = vpop.permute.xlu0 %362
        %366 = vset.pattern.permute.xlu0 0
        %367 = vperm.xlu0 %366, %v309
        %v368 = vpop.permute.xlu0 %367
        %371 = vset.pattern.permute.xlu0 0
        %372 = vperm.xlu0 %371, %v310
        %v373 = vpop.permute.xlu0 %372
        %376 = vset.pattern.permute.xlu0 0
        %377 = vperm.xlu0 %376, %v311
        %v378 = vpop.permute.xlu0 %377
        %381 = vset.pattern.permute.xlu0 0
        %382 = vperm.xlu0 %381, %v312
        %v383 = vpop.permute.xlu0 %382
        %386 = vset.pattern.permute.xlu0 0
        %387 = vperm.xlu0 %386, %v313
        %v388 = vpop.permute.xlu0 %387
        %391 = vset.pattern.permute.xlu0 0
        %392 = vperm.xlu0 %391, %v314
        %v393 = vpop.permute.xlu0 %392
        %396 = vset.pattern.permute.xlu0 0
        %397 = vperm.xlu0 %396, %v315
        %v398 = vpop.permute.xlu0 %397
        %401 = vset.pattern.permute.xlu0 0
        %402 = vperm.xlu0 %401, %v316
        %v403 = vpop.permute.xlu0 %402
        %406 = vset.pattern.permute.xlu0 0
        %407 = vperm.xlu0 %406, %v317
        %v408 = vpop.permute.xlu0 %407
        %411 = vset.pattern.permute.xlu0 0
        %412 = vperm.xlu0 %411, %v318
        %v413 = vpop.permute.xlu0 %412
        %416 = vset.pattern.permute.xlu0 0
        %417 = vperm.xlu0 %416, %v319
        %v418 = vpop.permute.xlu0 %417
        %421 = vset.pattern.permute.xlu0 0
        %422 = vperm.xlu0 %421, %v320
        %v423 = vpop.permute.xlu0 %422
        %426 = vset.pattern.permute.xlu0 0
        %427 = vperm.xlu0 %426, %v321
        %v428 = vpop.permute.xlu0 %427
        %431 = vset.pattern.permute.xlu0 0
        %432 = vperm.xlu0 %431, %v322
        %v433 = vpop.permute.xlu0 %432
        %436 = vset.pattern.permute.xlu0 0
        %437 = vperm.xlu0 %436, %v323
        %v438 = vpop.permute.xlu0 %437
        %441 = vset.pattern.permute.xlu0 0
        %442 = vperm.xlu0 %441, %v324
        %v443 = vpop.permute.xlu0 %442
        %446 = vset.pattern.permute.xlu0 0
        %447 = vperm.xlu0 %446, %v325
        %v448 = vpop.permute.xlu0 %447
        %451 = vset.pattern.permute.xlu0 0
        %452 = vperm.xlu0 %451, %v326
        %v453 = vpop.permute.xlu0 %452
        %456 = vset.pattern.permute.xlu0 0
        %457 = vperm.xlu0 %456, %v327
        %v458 = vpop.permute.xlu0 %457
        %461 = vset.pattern.permute.xlu0 0
        %462 = vperm.xlu0 %461, %v328
        %v463 = vpop.permute.xlu0 %462
        %466 = vset.pattern.permute.xlu0 0
        %467 = vperm.xlu0 %466, %v329
        %v468 = vpop.permute.xlu0 %467
        %471 = vset.pattern.permute.xlu0 0
        %472 = vperm.xlu0 %471, %v330
        %v473 = vpop.permute.xlu0 %472
        %476 = vset.pattern.permute.xlu0 0
        %477 = vperm.xlu0 %476, %v331
        %v478 = vpop.permute.xlu0 %477
        %481 = vset.pattern.permute.xlu0 0
        %482 = vperm.xlu0 %481, %v332
        %v483 = vpop.permute.xlu0 %482
        %486 = vset.pattern.permute.xlu0 0
        %487 = vperm.xlu0 %486, %v333
        %v488 = vpop.permute.xlu0 %487
        %491 = vset.pattern.permute.xlu0 0
        %492 = vperm.xlu0 %491, %v334
        %v493 = vpop.permute.xlu0 %492
        %v527 = vunpack.c.l.b16 %v271
        %v528 = vunpack.c.l.b16 %v272
        %v529 = vunpack.c.l.b16 %v273
        %v530 = vunpack.c.l.b16 %v274
        %v531 = vunpack.c.l.b16 %v275
        %v532 = vunpack.c.l.b16 %v276
        %v533 = vunpack.c.l.b16 %v277
        %v534 = vunpack.c.l.b16 %v278
        %v535 = vunpack.c.l.b16 %v279
        %v536 = vunpack.c.l.b16 %v280
        %v537 = vunpack.c.l.b16 %v281
        %v538 = vunpack.c.l.b16 %v282
        %v539 = vunpack.c.l.b16 %v283
        %v540 = vunpack.c.l.b16 %v284
        %v541 = vunpack.c.l.b16 %v285
        %v542 = vunpack.c.l.b16 %v286
        %v543 = vunpack.c.l.b16 %v287
        %v544 = vunpack.c.l.b16 %v288
        %v545 = vunpack.c.l.b16 %v289
        %v546 = vunpack.c.l.b16 %v290
        %v547 = vunpack.c.l.b16 %v291
        %v548 = vunpack.c.l.b16 %v292
        %v549 = vunpack.c.l.b16 %v293
        %v550 = vunpack.c.l.b16 %v294
        %v551 = vunpack.c.l.b16 %v295
        %v552 = vunpack.c.l.b16 %v296
        %v553 = vunpack.c.l.b16 %v297
        %v554 = vunpack.c.l.b16 %v298
        %v555 = vunpack.c.l.b16 %v299
        %v556 = vunpack.c.l.b16 %v300
        %v557 = vunpack.c.l.b16 %v301
        %v558 = vunpack.c.l.b16 %v302
        %v559 = vpack.c.b16 %v528, %v527
        %v560 = vpack.c.b16 %v530, %v529
        %v561 = vpack.c.b16 %v532, %v531
        %v562 = vpack.c.b16 %v534, %v533
        %v563 = vpack.c.b16 %v536, %v535
        %v564 = vpack.c.b16 %v538, %v537
        %v565 = vpack.c.b16 %v540, %v539
        %v566 = vpack.c.b16 %v542, %v541
        %v567 = vpack.c.b16 %v544, %v543
        %v568 = vpack.c.b16 %v546, %v545
        %v569 = vpack.c.b16 %v548, %v547
        %v570 = vpack.c.b16 %v550, %v549
        %v571 = vpack.c.b16 %v552, %v551
        %v572 = vpack.c.b16 %v554, %v553
        %v573 = vpack.c.b16 %v556, %v555
        %v574 = vpack.c.b16 %v558, %v557
        %591 = vmatprep.subr.bf16.mxu0 0
        %592 = vmatpush1.bf16.msra.mxu0 %v263
        %593 = vmatprep.subr.bf16.mxu0 0
        %594 = vmatpush1.bf16.msra.mxu0 %v264
        %595 = vmatprep.subr.bf16.mxu0 0
        %596 = vmatpush1.bf16.msra.mxu0 %v265
        %597 = vmatprep.subr.bf16.mxu0 0
        %598 = vmatpush1.bf16.msra.mxu0 %v266
        %599 = vmatprep.subr.bf16.mxu0 0
        %600 = vmatpush1.bf16.msra.mxu0 %v267
        %601 = vmatprep.subr.bf16.mxu0 0
        %602 = vmatpush1.bf16.msra.mxu0 %v268
        %603 = vmatprep.subr.bf16.mxu0 0
        %604 = vmatpush1.bf16.msra.mxu0 %v269
        %605 = vmatprep.subr.bf16.mxu0 0
        %606 = vmatpush1.bf16.msra.mxu0 %v270
        %607 = vmatprep.subr.bf16.mxu0 0
        %608 = vmatpush1.bf16.msra.mxu0 0
        %609 = vmatprep.subr.bf16.mxu0 0
        %610 = vmatpush1.bf16.msra.mxu0 0
        %611 = vmatprep.subr.bf16.mxu0 0
        %612 = vmatpush1.bf16.msra.mxu0 0
        %613 = vmatprep.subr.bf16.mxu0 0
        %614 = vmatpush1.bf16.msra.mxu0 0
        %615 = vmatprep.subr.bf16.mxu0 0
        %616 = vmatpush1.bf16.msra.mxu0 0
        %617 = vmatprep.subr.bf16.mxu0 0
        %618 = vmatpush1.bf16.msra.mxu0 0
        %619 = vmatprep.subr.bf16.mxu0 0
        %620 = vmatpush1.bf16.msra.mxu0 0
        %621 = vmatprep.subr.bf16.mxu0 0
        %622 = vmatpush1.bf16.msra.mxu0 0
        %623 = vmatprep.mubr.bf16.mxu0 0
        %624 = vmatmul.mubr.bf16.gmra.mrb[0].mxu0 %v559
        %v625 = vpop.f32.mrb[0].mxu0
        %v626 = vadd.f32 %v338, %v625
        %v627 = vpop.f32.mrb[0].mxu0
        %v628 = vpop.f32.mrb[0].mxu0
        %v629 = vadd.f32 %v343, %v628
        %v630 = vpop.f32.mrb[0].mxu0
        %631 = vmatprep.mubr.bf16.mxu0 0
        %632 = vmatmul.mubr.bf16.gmra.mrb[0].mxu0 %v560
        %v633 = vpop.f32.mrb[0].mxu0
        %v634 = vadd.f32 %v348, %v633
        %v635 = vpop.f32.mrb[0].mxu0
        %v636 = vpop.f32.mrb[0].mxu0
        %v637 = vadd.f32 %v353, %v636
        %v638 = vpop.f32.mrb[0].mxu0
        %639 = vmatprep.mubr.bf16.mxu0 0
        %640 = vmatmul.mubr.bf16.gmra.mrb[0].mxu0 %v561
        %v641 = vpop.f32.mrb[0].mxu0
        %v642 = vadd.f32 %v358, %v641
        %v643 = vpop.f32.mrb[0].mxu0
        %v644 = vpop.f32.mrb[0].mxu0
        %v645 = vadd.f32 %v363, %v644
        %v646 = vpop.f32.mrb[0].mxu0
        %647 = vmatprep.mubr.bf16.mxu0 0
        %648 = vmatmul.mubr.bf16.gmra.mrb[0].mxu0 %v562
        %v649 = vpop.f32.mrb[0].mxu0
        %v650 = vadd.f32 %v368, %v649
        %v651 = vpop.f32.mrb[0].mxu0
        %v652 = vpop.f32.mrb[0].mxu0
        %v653 = vadd.f32 %v373, %v652
        %v654 = vpop.f32.mrb[0].mxu0
        %655 = vmatprep.mubr.bf16.mxu0 0
        %656 = vmatmul.mubr.bf16.gmra.mrb[0].mxu0 %v563
        %v657 = vpop.f32.mrb[0].mxu0
        %v658 = vadd.f32 %v378, %v657
        %v659 = vpop.f32.mrb[0].mxu0
        %v660 = vpop.f32.mrb[0].mxu0
        %v661 = vadd.f32 %v383, %v660
        %v662 = vpop.f32.mrb[0].mxu0
        %663 = vmatprep.mubr.bf16.mxu0 0
        %664 = vmatmul.mubr.bf16.gmra.mrb[0].mxu0 %v564
        %v665 = vpop.f32.mrb[0].mxu0
        %v666 = vadd.f32 %v388, %v665
        %v667 = vpop.f32.mrb[0].mxu0
        %v668 = vpop.f32.mrb[0].mxu0
        %v669 = vadd.f32 %v393, %v668
        %v670 = vpop.f32.mrb[0].mxu0
        %671 = vmatprep.mubr.bf16.mxu0 0
        %672 = vmatmul.mubr.bf16.gmra.mrb[0].mxu0 %v565
        %v673 = vpop.f32.mrb[0].mxu0
        %v674 = vadd.f32 %v398, %v673
        %v675 = vpop.f32.mrb[0].mxu0
        %v676 = vpop.f32.mrb[0].mxu0
        %v677 = vadd.f32 %v403, %v676
        %v678 = vpop.f32.mrb[0].mxu0
        %679 = vmatprep.mubr.bf16.mxu0 0
        %680 = vmatmul.mubr.bf16.gmra.mrb[0].mxu0 %v566
        %v681 = vpop.f32.mrb[0].mxu0
        %v682 = vadd.f32 %v408, %v681
        %v683 = vpop.f32.mrb[0].mxu0
        %v684 = vpop.f32.mrb[0].mxu0
        %v685 = vadd.f32 %v413, %v684
        %v686 = vpop.f32.mrb[0].mxu0
        %687 = vmatprep.mubr.bf16.mxu0 0
        %688 = vmatmul.mubr.bf16.gmra.mrb[0].mxu0 %v567
        %v689 = vpop.f32.mrb[0].mxu0
        %v690 = vadd.f32 %v418, %v689
        %v691 = vpop.f32.mrb[0].mxu0
        %v692 = vpop.f32.mrb[0].mxu0
        %v693 = vadd.f32 %v423, %v692
        %v694 = vpop.f32.mrb[0].mxu0
        %695 = vmatprep.mubr.bf16.mxu0 0
        %696 = vmatmul.mubr.bf16.gmra.mrb[0].mxu0 %v568
        %v697 = vpop.f32.mrb[0].mxu0
        %v698 = vadd.f32 %v428, %v697
        %v699 = vpop.f32.mrb[0].mxu0
        %v700 = vpop.f32.mrb[0].mxu0
        %v701 = vadd.f32 %v433, %v700
        %v702 = vpop.f32.mrb[0].mxu0
        %703 = vmatprep.mubr.bf16.mxu0 0
        %704 = vmatmul.mubr.bf16.gmra.mrb[0].mxu0 %v569
        %v705 = vpop.f32.mrb[0].mxu0
        %v706 = vadd.f32 %v438, %v705
        %v707 = vpop.f32.mrb[0].mxu0
        %v708 = vpop.f32.mrb[0].mxu0
        %v709 = vadd.f32 %v443, %v708
        %v710 = vpop.f32.mrb[0].mxu0
        %711 = vmatprep.mubr.bf16.mxu0 0
        %712 = vmatmul.mubr.bf16.gmra.mrb[0].mxu0 %v570
        %v713 = vpop.f32.mrb[0].mxu0
        %v714 = vadd.f32 %v448, %v713
        %v715 = vpop.f32.mrb[0].mxu0
        %v716 = vpop.f32.mrb[0].mxu0
        %v717 = vadd.f32 %v453, %v716
        %v718 = vpop.f32.mrb[0].mxu0
        %719 = vmatprep.mubr.bf16.mxu0 0
        %720 = vmatmul.mubr.bf16.gmra.mrb[0].mxu0 %v571
        %v721 = vpop.f32.mrb[0].mxu0
        %v722 = vadd.f32 %v458, %v721
        %v723 = vpop.f32.mrb[0].mxu0
        %v724 = vpop.f32.mrb[0].mxu0
        %v725 = vadd.f32 %v463, %v724
        %v726 = vpop.f32.mrb[0].mxu0
        %727 = vmatprep.mubr.bf16.mxu0 0
        %728 = vmatmul.mubr.bf16.gmra.mrb[0].mxu0 %v572
        %v729 = vpop.f32.mrb[0].mxu0
        %v730 = vadd.f32 %v468, %v729
        %v731 = vpop.f32.mrb[0].mxu0
        %v732 = vpop.f32.mrb[0].mxu0
        %v733 = vadd.f32 %v473, %v732
        %v734 = vpop.f32.mrb[0].mxu0
        %735 = vmatprep.mubr.bf16.mxu0 0
        %736 = vmatmul.mubr.bf16.gmra.mrb[0].mxu0 %v573
        %v737 = vpop.f32.mrb[0].mxu0
        %v738 = vadd.f32 %v478, %v737
        %v739 = vpop.f32.mrb[0].mxu0
        %v740 = vpop.f32.mrb[0].mxu0
        %v741 = vadd.f32 %v483, %v740
        %v742 = vpop.f32.mrb[0].mxu0
        %743 = vmatprep.mubr.bf16.mxu0 0
        %744 = vmatmul.mubr.bf16.gmra.mrb[0].mxu0 %v574
        %v745 = vpop.f32.mrb[0].mxu0
        %v746 = vadd.f32 %v488, %v745
        %v747 = vpop.f32.mrb[0].mxu0
        %v748 = vpop.f32.mrb[0].mxu0
        %v749 = vadd.f32 %v493, %v748
        %v750 = vpop.f32.mrb[0].mxu0
        %751 = vdwg.mxu0
        %v752 = vpack.c.bf16 %v629, %v626
        %v753 = vpack.c.bf16 %v637, %v634
        %v754 = vpack.c.bf16 %v645, %v642
        %v755 = vpack.c.bf16 %v653, %v650
        %v756 = vpack.c.bf16 %v661, %v658
        %v757 = vpack.c.bf16 %v669, %v666
        %v758 = vpack.c.bf16 %v677, %v674
        %v759 = vpack.c.bf16 %v685, %v682
        %v768 = vunpack.c.l.b16 %v752
        %v769 = vunpack.c.h.b16 %v752
        %v770 = vunpack.c.l.b16 %v753
        %v771 = vunpack.c.h.b16 %v753
        %v772 = vunpack.c.l.b16 %v754
        %v773 = vunpack.c.h.b16 %v754
        %v774 = vunpack.c.l.b16 %v755
        %v775 = vunpack.c.h.b16 %v755
        %v776 = vunpack.c.l.b16 %v756
        %v777 = vunpack.c.h.b16 %v756
        %v778 = vunpack.c.l.b16 %v757
        %v779 = vunpack.c.h.b16 %v757
        %v780 = vunpack.c.l.b16 %v758
        %v781 = vunpack.c.h.b16 %v758
        %v782 = vunpack.c.l.b16 %v759
        %v783 = vunpack.c.h.b16 %v759
        %v784 = vpack.c.b16 %v768, %v768
        %v785 = vpack.c.b16 %v769, %v769
        %v786 = vpack.c.b16 %v770, %v770
        %v787 = vpack.c.b16 %v771, %v771
        %v788 = vpack.c.b16 %v772, %v772
        %v789 = vpack.c.b16 %v773, %v773
        %v790 = vpack.c.b16 %v774, %v774
        %v791 = vpack.c.b16 %v775, %v775
        %v792 = vpack.c.b16 %v776, %v776
        %v793 = vpack.c.b16 %v777, %v777
        %v794 = vpack.c.b16 %v778, %v778
        %v795 = vpack.c.b16 %v779, %v779
        %v796 = vpack.c.b16 %v780, %v780
        %v797 = vpack.c.b16 %v781, %v781
        %v798 = vpack.c.b16 %v782, %v782
        %v799 = vpack.c.b16 %v783, %v783
        %816 = vst [vmem:[%s238] sm:$0xf] %v784
        %817 = vst [vmem:[%s238 + $0x4] sm:$0xf] %v785
        %818 = vst [vmem:[%s238 + $0x8] sm:$0xf] %v786
        %819 = vst [vmem:[%s238 + $0xc] sm:$0xf] %v787
        %820 = vst [vmem:[%s238 + $0x10] sm:$0xf] %v788
        %821 = vst [vmem:[%s238 + $0x14] sm:$0xf] %v789
        %822 = vst [vmem:[%s238 + $0x18] sm:$0xf] %v790
        %823 = vst [vmem:[%s238 + $0x1c] sm:$0xf] %v791
        %824 = vst [vmem:[%s238 + $0x20] sm:$0xf] %v792
        %825 = vst [vmem:[%s238 + $0x24] sm:$0xf] %v793
        %826 = vst [vmem:[%s238 + $0x28] sm:$0xf] %v794
        %827 = vst [vmem:[%s238 + $0x2c] sm:$0xf] %v795
        %828 = vst [vmem:[%s238 + $0x30] sm:$0xf] %v796
        %829 = vst [vmem:[%s238 + $0x34] sm:$0xf] %v797
        %830 = vst [vmem:[%s238 + $0x38] sm:$0xf] %v798
        %831 = vst [vmem:[%s238 + $0x3c] sm:$0xf] %v799
        %v832 = vpack.c.bf16 %v693, %v690
        %v833 = vpack.c.bf16 %v701, %v698
        %v834 = vpack.c.bf16 %v709, %v706
        %v835 = vpack.c.bf16 %v717, %v714
        %v836 = vpack.c.bf16 %v725, %v722
        %v837 = vpack.c.bf16 %v733, %v730
        %v838 = vpack.c.bf16 %v741, %v738
        %v839 = vpack.c.bf16 %v749, %v746
        %v848 = vunpack.c.l.b16 %v832
        %v849 = vunpack.c.h.b16 %v832
        %v850 = vunpack.c.l.b16 %v833
        %v851 = vunpack.c.h.b16 %v833
        %v852 = vunpack.c.l.b16 %v834
        %v853 = vunpack.c.h.b16 %v834
        %v854 = vunpack.c.l.b16 %v835
        %v855 = vunpack.c.h.b16 %v835
        %v856 = vunpack.c.l.b16 %v836
        %v857 = vunpack.c.h.b16 %v836
        %v858 = vunpack.c.l.b16 %v837
        %v859 = vunpack.c.h.b16 %v837
        %v860 = vunpack.c.l.b16 %v838
        %v861 = vunpack.c.h.b16 %v838
        %v862 = vunpack.c.l.b16 %v839
        %v863 = vunpack.c.h.b16 %v839
        %v864 = vpack.c.b16 %v848, %v848
        %v865 = vpack.c.b16 %v849, %v849
        %v866 = vpack.c.b16 %v850, %v850
        %v867 = vpack.c.b16 %v851, %v851
        %v868 = vpack.c.b16 %v852, %v852
        %v869 = vpack.c.b16 %v853, %v853
        %v870 = vpack.c.b16 %v854, %v854
        %v871 = vpack.c.b16 %v855, %v855
        %v872 = vpack.c.b16 %v856, %v856
        %v873 = vpack.c.b16 %v857, %v857
        %v874 = vpack.c.b16 %v858, %v858
        %v875 = vpack.c.b16 %v859, %v859
        %v876 = vpack.c.b16 %v860, %v860
        %v877 = vpack.c.b16 %v861, %v861
        %v878 = vpack.c.b16 %v862, %v862
        %v879 = vpack.c.b16 %v863, %v863
        %896 = vst [vmem:[%s245] sm:$0xf] %v864
        %897 = vst [vmem:[%s245 + $0x4] sm:$0xf] %v865
        %898 = vst [vmem:[%s245 + $0x8] sm:$0xf] %v866
        %899 = vst [vmem:[%s245 + $0xc] sm:$0xf] %v867
        %900 = vst [vmem:[%s245 + $0x10] sm:$0xf] %v868
        %901 = vst [vmem:[%s245 + $0x14] sm:$0xf] %v869
        %902 = vst [vmem:[%s245 + $0x18] sm:$0xf] %v870
        %903 = vst [vmem:[%s245 + $0x1c] sm:$0xf] %v871
        %904 = vst [vmem:[%s245 + $0x20] sm:$0xf] %v872
        %905 = vst [vmem:[%s245 + $0x24] sm:$0xf] %v873
        %906 = vst [vmem:[%s245 + $0x28] sm:$0xf] %v874
        %907 = vst [vmem:[%s245 + $0x2c] sm:$0xf] %v875
        %908 = vst [vmem:[%s245 + $0x30] sm:$0xf] %v876
        %909 = vst [vmem:[%s245 + $0x34] sm:$0xf] %v877
        %910 = vst [vmem:[%s245 + $0x38] sm:$0xf] %v878
        %911 = vst [vmem:[%s245 + $0x3c] sm:$0xf] %v879
        %s912 = sand.u32 %s117, 1
        %s913 = scalar_lea.sflag [#allocation4], %s912
        %s914 = sand.u32 %s117, 1
        %s915 = smul.addr %s914, 64
        %s916 = scalar_lea.vmem [#allocation5], %s915
        %s917 = sand.u32 %s145, 1
        %s918 = scalar_lea.sflag [#allocation7], %s917
        %s919 = sand.u32 %s145, 1
        %s920 = smul.addr %s919, 64
        %s921 = scalar_lea.vmem [#allocation6], %s920
        // Predicated region
        $region37: #{tpu_custom_call.1} parent=31 // pred_check
          %p922 = pneg %p127
        $region38: #{tpu_custom_call.1} parent=31 // pred_check_branch
          %924 = sbr.rel (%p922) target = $region40
        $region39: #{tpu_custom_call.1} parent=31 // pred_region
          %s926 = ssub.s32 1024, 1024
          %927 = vsyncadd %s913, %s926
          %s928 = smul.addr %s29, 32
          %s929 = sadd.s32 %s30, %s928
          %s930 = smul.addr %s929, 64
          %s931 = scalar_lea.hbm %s3, %s930
          %s932 = sshll.u32 %s916, 4
          %s933 = int_to_ptr.vmem [resolvable:$true] %s932
          %938 = dma.vmem_to_hbm [thread:$0]  %s933, 1024, %s931, %s913, 64, 128, 4
        $region40: #{tpu_custom_call.1} parent=31 // pred_fallthru
          _
        // Predicated region
        $region41: #{tpu_custom_call.1} parent=31 // pred_check
          %p939 = pneg %p155
        $region42: #{tpu_custom_call.1} parent=31 // pred_check_branch
          %941 = sbr.rel (%p939) target = $region44
        $region43: #{tpu_custom_call.1} parent=31 // pred_region
          %s943 = ssub.s32 1024, 1024
          %944 = vsyncadd %s918, %s943
          %s945 = smul.addr %s29, 32
          %s946 = sadd.s32 %s30, %s945
          %s947 = smul.addr %s946, 64
          %s948 = scalar_lea.hbm %s4, %s947
          %s949 = sshll.u32 %s921, 4
          %s950 = int_to_ptr.vmem [resolvable:$true] %s949
          %955 = dma.vmem_to_hbm [thread:$0]  %s950, 1024, %s948, %s918, 64, 128, 4
        $region44: #{tpu_custom_call.1} parent=31 // pred_fallthru
          _
      $region32: #{tpu_custom_call.1} parent=5 // pred_fallthru
        _
      %p956 = scmp.le.s32.totalorder 2, %s20
      // Predicated region
      $region45: #{tpu_custom_call.1} parent=5 // pred_check
        %p957 = pneg %p956
      $region46: #{tpu_custom_call.1} parent=5 // pred_check_branch
        %959 = sbr.rel (%p957) target = $region48
      $region47: #{tpu_custom_call.1} parent=5 // pred_region
        %s960 = ssub.s32 %s20, 2
        // Predicated region
        $region49: #{tpu_custom_call.1} parent=47 // pred_check
          %p961 = pneg %p133
        $region50: #{tpu_custom_call.1} parent=47 // pred_check_branch
          %963 = sbr.rel (%p961) target = $region52
        $region51: #{tpu_custom_call.1} parent=47 // pred_region
          %s964 = sand.u32 %s118, 1
          %s965 = scalar_lea.sflag [#allocation4], %s964
          %s966 = sand.u32 %s118, 1
          %s967 = smul.addr %s966, 64
          %s968 = scalar_lea.vmem [#allocation5], %s967
          %969 = dma.done %s965, 1024
        $region52: #{tpu_custom_call.1} parent=47 // pred_fallthru
          _
        // Predicated region
        $region53: #{tpu_custom_call.1} parent=47 // pred_check
          %p970 = pneg %p161
        $region54: #{tpu_custom_call.1} parent=47 // pred_check_branch
          %972 = sbr.rel (%p970) target = $region56
        $region55: #{tpu_custom_call.1} parent=47 // pred_region
          %s973 = sand.u32 %s146, 1
          %s974 = scalar_lea.sflag [#allocation7], %s973
          %s975 = sand.u32 %s146, 1
          %s976 = smul.addr %s975, 64
          %s977 = scalar_lea.vmem [#allocation6], %s976
          %978 = dma.done %s974, 1024
        $region56: #{tpu_custom_call.1} parent=47 // pred_fallthru
          _
      $region48: #{tpu_custom_call.1} parent=5 // pred_fallthru
        _
    $region6: #{tpu_custom_call.1} parent=1 // loop_footer
      %s24 = sadd.s32 1, %s20
    $region7: #{tpu_custom_call.1} parent=1 // loop_footer_branch
      %19 = sbr.rel target = $region3
    $region8: #{tpu_custom_call.1} parent=1 // loop_exit
      _
    %979 = vsyncpa [#allocation3], 1
    %s980 = scalar_lea.sflag [#allocation3], 1
    %981 = vsyncpa %s980, 1
    %982 = vsyncpa [#allocation4], 1
    %s983 = scalar_lea.sflag [#allocation4], 1
    %984 = vsyncpa %s983, 1
    %985 = vsyncpa [#allocation7], 1
    %s986 = scalar_lea.sflag [#allocation7], 1
    %987 = vsyncpa %s986, 1

</llo_original>
